<compile_context>
chip_gen: v5e
topology: v5e:2x2
jax: 0.10.0
libtpu: 0.0.40
codegen_flags: <defaults>
</compile_context>

<pallas_src>
import functools

import jax
import jax.numpy as jnp
from jax.experimental import pallas as pl
from jax.experimental.pallas import tpu as pltpu


def integrand_kernel(xt_ref, ht_ref, w1x_ref, w1h_ref, b1_ref,
                     w2_ref, b2_ref, w3_ref, b3_ref, o_ref,
                     *, use_bf16_matmul):
    """Feature-major tile: every activation is (features, TB), batch on lanes.

    Layer 1 (K = dx + dh, tiny) -> VPU rank-1 updates (keeps the MXU free)
    Layer 2 (H2 x H1 x TB)      -> the one well-shaped MXU matmul
    Layer 3 (M = 1)             -> VPU multiply + XLU sublane reduction
    ELU(.) + 1 + 1e-8           -> fused per-branch select
    """
    xt = xt_ref[...]                                   # (dx, TB)
    ht = ht_ref[...]                                   # (dh, TB)
    w1x = w1x_ref[...]                                 # (H1, dx)
    w1h = w1h_ref[...]                                 # (H1, dh)
    dx = xt.shape[0]
    dh = ht.shape[0]

    # ---- Layer 1 on the VPU: sum of rank-1 (column x row) updates. ---------
    a1 = w1x[:, 0:1] * xt[0:1, :]                      # (H1,1)*(1,TB) -> (H1,TB)
    for k in range(1, dx):
        a1 = a1 + w1x[:, k:k + 1] * xt[k:k + 1, :]
    for k in range(dh):
        a1 = a1 + w1h[:, k:k + 1] * ht[k:k + 1, :]
    a1 = jnp.maximum(a1 + b1_ref[...], 0.0)            # ReLU, (H1, TB)

    # ---- Layer 2 on the MXU (optionally bf16 operands, f32 accumulate). ----
    w2 = w2_ref[...]                                   # (H2, H1)
    if use_bf16_matmul:
        a2 = jnp.dot(w2.astype(jnp.bfloat16), a1.astype(jnp.bfloat16),
                     preferred_element_type=jnp.float32)
    else:
        a2 = jnp.dot(w2, a1, preferred_element_type=jnp.float32)
    a2 = jnp.maximum(a2 + b2_ref[...], 0.0)            # ReLU, (H2, TB)

    # ---- Layer 3 (single output row): VPU multiply + sublane reduce. -------
    a3 = jnp.sum(w3_ref[...] * a2, axis=0, keepdims=True) + b3_ref[...]  # (1,TB)

    # ---- ELU(a3) + 1 + 1e-8 with the +1 folded into each branch. -----------
    #   a3 > 0 : a3 + (1 + 1e-8)
    #   a3 <= 0: expm1(a3) + 1 + 1e-8 == exp(a3) + 1e-8   (stays > 0)
    o_ref[...] = jnp.where(a3 > 0.0,
                           a3 + jnp.float32(1.0 + 1e-8),
                           jnp.exp(a3) + jnp.float32(1e-8))


def prepare_params(params, dx):
    """One-time preprocessing of the Linear params into kernel layout.

    params = (w1, b1, w2, b2, w3, b3) with weights stored (fan_in, fan_out)
    (transposed vs. nn.Linear.weight).  Call once and reuse across the UMNN
    quadrature loop.
    """
    w1, b1, w2, b2, w3, b3 = params
    w1t = jnp.asarray(w1, jnp.float32).T               # (H1, in_d)
    return (w1t[:, :dx],                               # (H1, dx)
            w1t[:, dx:],                               # (H1, dh)
            jnp.asarray(b1, jnp.float32).reshape(-1, 1),
            jnp.asarray(w2, jnp.float32).T,            # (H2, H1)
            jnp.asarray(b2, jnp.float32).reshape(-1, 1),
            jnp.asarray(w3, jnp.float32).reshape(-1, 1),   # (H2, 1) column
            jnp.asarray(b3, jnp.float32).reshape(1, 1))


@functools.partial(jax.jit, static_argnames=("tb_max", "use_bf16_matmul"))
def integrand_nn_forward_fm(xt, ht, kparams, tb_max=32768, use_bf16_matmul=False):
    """Feature-major hot-path entry: xt (dx, B), ht (dh, B), kparams from
    prepare_params.  Returns (B, 1) float32."""
    w1x, w1h, b1c, w2t, b2c, w3c, b3c = kparams
    dx, B = xt.shape
    dh = ht.shape[0]

    # Lane-dense batch tile: forced multiple of 128, capped at tb_max, and kept
    # small enough that the grid has >= 2 steps when B allows (so the
    # "parallel" axis feeds both v7x TensorCores).  No wrapper-side padding:
    # the ragged last block is masked by Pallas on writeback.
    tb_cap = max(128, (int(tb_max) // 128) * 128)
    tb_two = 128 * pl.cdiv(pl.cdiv(B, 2), 128)
    tb = max(128, min(tb_cap, tb_two))
    nb = pl.cdiv(B, tb)

    def resident(a):
        # Whole (tiny) array, same block every grid step -> stays in VMEM.
        return pl.BlockSpec(a.shape, lambda i: (0, 0))

    out = pl.pallas_call(
        functools.partial(integrand_kernel, use_bf16_matmul=use_bf16_matmul),
        out_shape=jax.ShapeDtypeStruct((1, B), jnp.float32),
        grid=(nb,),
        in_specs=[
            pl.BlockSpec((dx, tb), lambda i: (0, i)),
            pl.BlockSpec((dh, tb), lambda i: (0, i)),
            resident(w1x), resident(w1h), resident(b1c),
            resident(w2t), resident(b2c), resident(w3c), resident(b3c),
        ],
        out_specs=pl.BlockSpec((1, tb), lambda i: (0, i)),
        compiler_params=pltpu.CompilerParams(
            dimension_semantics=("parallel",),
            vmem_limit_bytes=64 * 1024 * 1024),
    )(xt.astype(jnp.float32), ht.astype(jnp.float32),
      w1x, w1h, b1c, w2t, b2c, w3c, b3c)

    # (1, B) -> (B, 1) to match the PyTorch output shape.
    return out.reshape(B, 1)


def integrand_nn_forward(x, h, params, tb_max=32768, use_bf16_matmul=False):
    """Batch-major convenience wrapper matching the PyTorch signature:
    x (B, dx), h (B, dh).  The transposes / weight prep here should be hoisted
    out of the quadrature loop via prepare_params + integrand_nn_forward_fm."""
    dx = x.shape[1]
    kparams = prepare_params(params, dx)
    return integrand_nn_forward_fm(jnp.asarray(x, jnp.float32).T,
                                   jnp.asarray(h, jnp.float32).T,
                                   kparams, tb_max=tb_max,
                                   use_bf16_matmul=use_bf16_matmul)


def init_params(key, in_d, hidden_layers):
    """Deterministic init matching the layer shapes of IntegrandNN.__init__.

    Weights stored (fan_in, fan_out) (transposed vs. nn.Linear.weight),
    biases as (1, fan_out) rows.
    """
    hs = [in_d] + list(hidden_layers) + [1]
    params = []
    for h0, h1 in zip(hs, hs[1:]):
        key, kw, kb = jax.random.split(key, 3)
        bound = 1.0 / jnp.sqrt(h0)
        w = jax.random.uniform(kw, (h0, h1), jnp.float32, -bound, bound)
        b = jax.random.uniform(kb, (1, h1), jnp.float32, -bound, bound)
        params.extend([w, b])
    return tuple(params)


def reference_forward(x, h, params):
    """Pure-JAX reference of the PyTorch forward, for correctness checking."""
    w1, b1, w2, b2, w3, b3 = params
    z = jnp.concatenate((x, h), axis=1).astype(jnp.float32)
    a = jnp.maximum(z @ w1 + b1, 0.0)
    a = jnp.maximum(a @ w2 + b2, 0.0)
    a = a @ w3 + b3
    a = jnp.where(a > 0.0, a, jnp.expm1(a))            # ELU (PyTorch uses expm1)
    return a + 1.0 + 1e-8


if __name__ == "__main__":
    # Shapes consistent with UMNN usage: x is the integration variable (B, 1),
    # h the conditioning embedding (B, in_d - 1).
    B = 8
    dx, dh = 1, 3
    in_d = dx + dh
    hidden_layers = [32, 32]

    key = jax.random.PRNGKey(0)
    kx, kh, kp = jax.random.split(key, 3)
    x = jax.random.normal(kx, (B, dx), jnp.float32)
    h = jax.random.normal(kh, (B, dh), jnp.float32)
    params = init_params(kp, in_d, hidden_layers)

    # 1) Small batch through the batch-major convenience wrapper.
    out = jax.block_until_ready(integrand_nn_forward(x, h, params))
    ref = reference_forward(x, h, params)
    assert out.shape == (B, 1)
    assert jnp.allclose(out, ref, atol=1e-4, rtol=1e-4)

    # 2) Multi-step grid + ragged last block (no wrapper-side padding) via the
    #    hoisted feature-major hot path.
    B2 = 300
    kx2, kh2 = jax.random.split(jax.random.PRNGKey(1))
    x2 = jax.random.normal(kx2, (B2, dx), jnp.float32)
    h2 = jax.random.normal(kh2, (B2, dh), jnp.float32)
    kparams = prepare_params(params, dx)
    xt2, ht2 = x2.T, h2.T                      # hoisted once (UMNN reuses h)
    out2 = jax.block_until_ready(
        integrand_nn_forward_fm(xt2, ht2, kparams, tb_max=128))
    ref2 = reference_forward(x2, h2, params)
    assert out2.shape == (B2, 1)
    assert jnp.allclose(out2, ref2, atol=1e-4, rtol=1e-4)

    # 3) Default tiling (>= 2 grid steps for B2) and the optional bf16 MXU
    #    layer-2 path (looser tolerance; gate it for numerics-sensitive users).
    out3 = jax.block_until_ready(
        integrand_nn_forward_fm(xt2, ht2, kparams, use_bf16_matmul=True))
    assert out3.shape == (B2, 1)
    assert jnp.allclose(out3, ref2, atol=3e-2, rtol=3e-2)

    print("KERNEL_OK")
</pallas_src>

<mosaic_0001>
module attributes {stable_mosaic.version = 11 : i64} {
  func.func @integrand_kernel(%arg0: i32, %arg1: memref<1x128xf32, #tpu.memory_space<vmem>>, %arg2: memref<3x128xf32, #tpu.memory_space<vmem>>, %arg3: memref<32x1xf32, #tpu.memory_space<vmem>>, %arg4: memref<32x3xf32, #tpu.memory_space<vmem>>, %arg5: memref<32x1xf32, #tpu.memory_space<vmem>>, %arg6: memref<32x32xf32, #tpu.memory_space<vmem>>, %arg7: memref<32x1xf32, #tpu.memory_space<vmem>>, %arg8: memref<32x1xf32, #tpu.memory_space<vmem>>, %arg9: memref<1x1xf32, #tpu.memory_space<vmem>>, %arg10: memref<1x128xf32, #tpu.memory_space<vmem>>) attributes {dimension_semantics = [#tpu.dimension_semantics<parallel>], iteration_bounds = array<i64: 1>, scalar_prefetch = 0 : i64, scratch_operands = 0 : i64, tpu.core_type = #tpu.core_type<tc>, window_params = [{transform_indices = @transform_0, window_bounds = array<i64: 1, 128>}, {transform_indices = @transform_1, window_bounds = array<i64: 3, 128>}, {pipeline_mode = #tpu.pipeline_mode<synchronous>, transform_indices = @transform_2, window_bounds = array<i64: 32, 1>}, {pipeline_mode = #tpu.pipeline_mode<synchronous>, transform_indices = @transform_3, window_bounds = array<i64: 32, 3>}, {pipeline_mode = #tpu.pipeline_mode<synchronous>, transform_indices = @transform_4, window_bounds = array<i64: 32, 1>}, {pipeline_mode = #tpu.pipeline_mode<synchronous>, transform_indices = @transform_5, window_bounds = array<i64: 32, 32>}, {pipeline_mode = #tpu.pipeline_mode<synchronous>, transform_indices = @transform_6, window_bounds = array<i64: 32, 1>}, {pipeline_mode = #tpu.pipeline_mode<synchronous>, transform_indices = @transform_7, window_bounds = array<i64: 32, 1>}, {pipeline_mode = #tpu.pipeline_mode<synchronous>, transform_indices = @transform_8, window_bounds = array<i64: 1, 1>}, {transform_indices = @transform_9, window_bounds = array<i64: 1, 128>}]} {
    %c0 = arith.constant 0 : index
    %c0_0 = arith.constant 0 : index
    %0 = vector.load %arg1[%c0, %c0_0] : memref<1x128xf32, #tpu.memory_space<vmem>>, vector<1x128xf32>
    %c0_1 = arith.constant 0 : index
    %c0_2 = arith.constant 0 : index
    %1 = vector.load %arg2[%c0_1, %c0_2] : memref<3x128xf32, #tpu.memory_space<vmem>>, vector<3x128xf32>
    %c0_3 = arith.constant 0 : index
    %c0_4 = arith.constant 0 : index
    %2 = vector.load %arg3[%c0_3, %c0_4] : memref<32x1xf32, #tpu.memory_space<vmem>>, vector<32x1xf32>
    %c0_5 = arith.constant 0 : index
    %c0_6 = arith.constant 0 : index
    %3 = vector.load %arg4[%c0_5, %c0_6] : memref<32x3xf32, #tpu.memory_space<vmem>>, vector<32x3xf32>
    %4 = vector.broadcast %2 : vector<32x1xf32> to vector<32x128xf32>
    %5 = vector.broadcast %0 : vector<1x128xf32> to vector<32x128xf32>
    %6 = arith.mulf %4, %5 : vector<32x128xf32>
    %7 = vector.extract_strided_slice %3 {offsets = [0, 0], sizes = [32, 1], strides = [1, 1]} : vector<32x3xf32> to vector<32x1xf32>
    %8 = vector.extract_strided_slice %1 {offsets = [0, 0], sizes = [1, 128], strides = [1, 1]} : vector<3x128xf32> to vector<1x128xf32>
    %9 = vector.broadcast %7 : vector<32x1xf32> to vector<32x128xf32>
    %10 = vector.broadcast %8 : vector<1x128xf32> to vector<32x128xf32>
    %11 = arith.mulf %9, %10 : vector<32x128xf32>
    %12 = arith.addf %6, %11 : vector<32x128xf32>
    %13 = vector.extract_strided_slice %3 {offsets = [0, 1], sizes = [32, 1], strides = [1, 1]} : vector<32x3xf32> to vector<32x1xf32>
    %14 = vector.extract_strided_slice %1 {offsets = [1, 0], sizes = [1, 128], strides = [1, 1]} : vector<3x128xf32> to vector<1x128xf32>
    %15 = vector.broadcast %13 : vector<32x1xf32> to vector<32x128xf32>
    %16 = vector.broadcast %14 : vector<1x128xf32> to vector<32x128xf32>
    %17 = arith.mulf %15, %16 : vector<32x128xf32>
    %18 = arith.addf %12, %17 : vector<32x128xf32>
    %19 = vector.extract_strided_slice %3 {offsets = [0, 2], sizes = [32, 1], strides = [1, 1]} : vector<32x3xf32> to vector<32x1xf32>
    %20 = vector.extract_strided_slice %1 {offsets = [2, 0], sizes = [1, 128], strides = [1, 1]} : vector<3x128xf32> to vector<1x128xf32>
    %21 = vector.broadcast %19 : vector<32x1xf32> to vector<32x128xf32>
    %22 = vector.broadcast %20 : vector<1x128xf32> to vector<32x128xf32>
    %23 = arith.mulf %21, %22 : vector<32x128xf32>
    %24 = arith.addf %18, %23 : vector<32x128xf32>
    %c0_7 = arith.constant 0 : index
    %c0_8 = arith.constant 0 : index
    %25 = vector.load %arg5[%c0_7, %c0_8] : memref<32x1xf32, #tpu.memory_space<vmem>>, vector<32x1xf32>
    %26 = vector.broadcast %25 : vector<32x1xf32> to vector<32x128xf32>
    %27 = arith.addf %24, %26 : vector<32x128xf32>
    %cst = arith.constant 0.000000e+00 : f32
    %28 = vector.broadcast %cst : f32 to vector<32x128xf32>
    %29 = arith.maximumf %27, %28 : vector<32x128xf32>
    %c0_9 = arith.constant 0 : index
    %c0_10 = arith.constant 0 : index
    %30 = vector.load %arg6[%c0_9, %c0_10] : memref<32x32xf32, #tpu.memory_space<vmem>>, vector<32x32xf32>
    %cst_11 = arith.constant dense<0.000000e+00> : vector<32x128xf32>
    %31 = tpu.matmul %30, %29, %cst_11 {dimension_numbers = #tpu.dot_dimension_numbers<[1], [0], [0], [1], [0, 0, 1, 1], [], []>} : vector<32x32xf32>, vector<32x128xf32>, vector<32x128xf32> -> vector<32x128xf32>
    %c0_12 = arith.constant 0 : index
    %c0_13 = arith.constant 0 : index
    %32 = vector.load %arg7[%c0_12, %c0_13] : memref<32x1xf32, #tpu.memory_space<vmem>>, vector<32x1xf32>
    %33 = vector.broadcast %32 : vector<32x1xf32> to vector<32x128xf32>
    %34 = arith.addf %31, %33 : vector<32x128xf32>
    %cst_14 = arith.constant 0.000000e+00 : f32
    %35 = vector.broadcast %cst_14 : f32 to vector<32x128xf32>
    %36 = arith.maximumf %34, %35 : vector<32x128xf32>
    %c0_15 = arith.constant 0 : index
    %c0_16 = arith.constant 0 : index
    %37 = vector.load %arg8[%c0_15, %c0_16] : memref<32x1xf32, #tpu.memory_space<vmem>>, vector<32x1xf32>
    %38 = vector.broadcast %37 : vector<32x1xf32> to vector<32x128xf32>
    %39 = arith.mulf %38, %36 : vector<32x128xf32>
    %cst_17 = arith.constant dense<0.000000e+00> : vector<128xf32>
    %40 = vector.multi_reduction <add>, %39, %cst_17 [0] : vector<32x128xf32> to vector<128xf32>
    %41 = vector.shape_cast %40 : vector<128xf32> to vector<1x128xf32>
    %c0_18 = arith.constant 0 : index
    %c0_19 = arith.constant 0 : index
    %42 = vector.load %arg9[%c0_18, %c0_19] : memref<1x1xf32, #tpu.memory_space<vmem>>, vector<1x1xf32>
    %43 = vector.broadcast %42 : vector<1x1xf32> to vector<1x128xf32>
    %44 = arith.addf %41, %43 : vector<1x128xf32>
    %cst_20 = arith.constant 0.000000e+00 : f32
    %45 = vector.broadcast %cst_20 : f32 to vector<1x128xf32>
    %46 = arith.cmpf ogt, %44, %45 : vector<1x128xf32>
    %cst_21 = arith.constant 1.000000e+00 : f32
    %47 = vector.broadcast %cst_21 : f32 to vector<1x128xf32>
    %48 = arith.addf %44, %47 : vector<1x128xf32>
    %49 = math.exp %44 : vector<1x128xf32>
    %cst_22 = arith.constant 9.99999993E-9 : f32
    %50 = vector.broadcast %cst_22 : f32 to vector<1x128xf32>
    %51 = arith.addf %49, %50 : vector<1x128xf32>
    %52 = arith.select %46, %48, %51 : vector<1x128xi1>, vector<1x128xf32>
    %c0_23 = arith.constant 0 : index
    %c0_24 = arith.constant 0 : index
    %53 = vector.load %arg10[%c0_23, %c0_24] : memref<1x128xf32, #tpu.memory_space<vmem>>, vector<1x128xf32>
    tpu.vector_store %arg10[%c0_23, %c0_24], %52 {strides = array<i32>} : memref<1x128xf32, #tpu.memory_space<vmem>>, vector<1x128xf32>,
    return
  }
  func.func @transform_0(%arg0: i32) -> (i32, i32) {
    %c0_i32 = arith.constant 0 : i32
    %c0_i32_0 = arith.constant 0 : i32
    return %c0_i32, %arg0 : i32, i32
  }
  func.func @transform_1(%arg0: i32) -> (i32, i32) {
    %c0_i32 = arith.constant 0 : i32
    %c0_i32_0 = arith.constant 0 : i32
    return %c0_i32, %arg0 : i32, i32
  }
  func.func @transform_2(%arg0: i32) -> (i32, i32) {
    %c0_i32 = arith.constant 0 : i32
    %c0_i32_0 = arith.constant 0 : i32
    %c0_i32_1 = arith.constant 0 : i32
    return %c0_i32, %c0_i32_0 : i32, i32
  }
  func.func @transform_3(%arg0: i32) -> (i32, i32) {
    %c0_i32 = arith.constant 0 : i32
    %c0_i32_0 = arith.constant 0 : i32
    %c0_i32_1 = arith.constant 0 : i32
    return %c0_i32, %c0_i32_0 : i32, i32
  }
  func.func @transform_4(%arg0: i32) -> (i32, i32) {
    %c0_i32 = arith.constant 0 : i32
    %c0_i32_0 = arith.constant 0 : i32
    %c0_i32_1 = arith.constant 0 : i32
    return %c0_i32, %c0_i32_0 : i32, i32
  }
  func.func @transform_5(%arg0: i32) -> (i32, i32) {
    %c0_i32 = arith.constant 0 : i32
    %c0_i32_0 = arith.constant 0 : i32
    %c0_i32_1 = arith.constant 0 : i32
    return %c0_i32, %c0_i32_0 : i32, i32
  }
  func.func @transform_6(%arg0: i32) -> (i32, i32) {
    %c0_i32 = arith.constant 0 : i32
    %c0_i32_0 = arith.constant 0 : i32
    %c0_i32_1 = arith.constant 0 : i32
    return %c0_i32, %c0_i32_0 : i32, i32
  }
  func.func @transform_7(%arg0: i32) -> (i32, i32) {
    %c0_i32 = arith.constant 0 : i32
    %c0_i32_0 = arith.constant 0 : i32
    %c0_i32_1 = arith.constant 0 : i32
    return %c0_i32, %c0_i32_0 : i32, i32
  }
  func.func @transform_8(%arg0: i32) -> (i32, i32) {
    %c0_i32 = arith.constant 0 : i32
    %c0_i32_0 = arith.constant 0 : i32
    %c0_i32_1 = arith.constant 0 : i32
    return %c0_i32, %c0_i32_0 : i32, i32
  }
  func.func @transform_9(%arg0: i32) -> (i32, i32) {
    %c0_i32 = arith.constant 0 : i32
    %c0_i32_0 = arith.constant 0 : i32
    return %c0_i32, %arg0 : i32, i32
  }
}

</mosaic_0001>

<llo_original>
// kernel: integrand_nn_forward_fm.1
$region0: #{integrand_nn_forward_fm.1}
  #allocation0 [shape = 'u32[]', space=smem, size = 0x4, offset = 0x4, fixed_abs, tag = 'smem constant byte address 0x4 - core index']
  #allocation1 [shape = 'u32[72,128]{1,0:T(1,128)}', space=vmem, size = 0x9000, scoped, tag = 'internal scratch']
  #allocation2 [shape = 'f32[1,1]{1,0:T(1,128)S(1)}', space=vmem, size = 0x200, scoped, tag = 'scoped memory for integrand_nn_forward_fm.1']
  %s0 = inlined_call_operand.vmem [shape: f32[1,8], index: 0, kind: input, shape index: {}]
  %s1 = inlined_call_operand.vmem [shape: f32[3,8], index: 1, kind: input, shape index: {}]
  %s2 = inlined_call_operand.vmem [shape: f32[32,1], index: 2, kind: input, shape index: {}]
  %s3 = inlined_call_operand.vmem [shape: f32[32,3], index: 3, kind: input, shape index: {}]
  %s4 = inlined_call_operand.vmem [shape: f32[32,1], index: 4, kind: input, shape index: {}]
  %s5 = inlined_call_operand.vmem [shape: f32[32,32], index: 5, kind: input, shape index: {}]
  %s6 = inlined_call_operand.vmem [shape: f32[32,1], index: 6, kind: input, shape index: {}]
  %s7 = inlined_call_operand.vmem [shape: f32[32,1], index: 7, kind: input, shape index: {}]
  %s8 = inlined_call_operand.<no memory space> [shape: f32[1,1], index: 8, kind: input, shape index: {}]
  %s9 = inlined_call_operand.hbm [shape: f32[1,8], index: 9, kind: output, shape index: {}]
  %s10 = sld [smem:[#allocation0]]
  $region46: #{integrand_nn_forward_fm.1} parent=0
    _
  %s12 = ssub.s32 1, %s10
  %s13 = scalar_select 0, %s12, %s10
  %v14 = vstv %s8
  %15 = vst [vmem:[#allocation2] sm:$0x1] %v14
  $region1: #{integrand_nn_forward_fm.1} parent=0
    #allocation3 [shape = 'u8[512]{0}', space=vmem, size = 0x400, scoped, tag = 'output window, operand 0, single buffered']
    #allocation4 [shape = 's32[1]{0}', space=sflag, size = 0x4, scoped, tag = 'scoped memory for integrand_nn_forward_fm.1']
    %16 = vsyncpa [#allocation4], 0
    // Predicated region
    $region2: #{integrand_nn_forward_fm.1} parent=1 // pred_check
      _
    $region3: #{integrand_nn_forward_fm.1} parent=1 // pred_check_branch
      %18 = sbr.rel (0) target = $region5
    $region4: #{integrand_nn_forward_fm.1} parent=1 // pred_region
      _
    $region5: #{integrand_nn_forward_fm.1} parent=1 // pred_fallthru
      _
    // Predicated region
    $region6: #{integrand_nn_forward_fm.1} parent=1 // pred_check
      _
    $region7: #{integrand_nn_forward_fm.1} parent=1 // pred_check_branch
      %20 = sbr.rel (0) target = $region9
    $region8: #{integrand_nn_forward_fm.1} parent=1 // pred_region
      _
    $region9: #{integrand_nn_forward_fm.1} parent=1 // pred_fallthru
      _
    // Predicated region
    $region10: #{integrand_nn_forward_fm.1} parent=1 // pred_check
      _
    $region11: #{integrand_nn_forward_fm.1} parent=1 // pred_check_branch
      %22 = sbr.rel (0) target = $region13
    $region12: #{integrand_nn_forward_fm.1} parent=1 // pred_region
      _
    $region13: #{integrand_nn_forward_fm.1} parent=1 // pred_fallthru
      _
    // Predicated region
    $region14: #{integrand_nn_forward_fm.1} parent=1 // pred_check
      _
    $region15: #{integrand_nn_forward_fm.1} parent=1 // pred_check_branch
      %24 = sbr.rel (0) target = $region17
    $region16: #{integrand_nn_forward_fm.1} parent=1 // pred_region
      _
    $region17: #{integrand_nn_forward_fm.1} parent=1 // pred_fallthru
      _
    // Predicated region
    $region18: #{integrand_nn_forward_fm.1} parent=1 // pred_check
      _
    $region19: #{integrand_nn_forward_fm.1} parent=1 // pred_check_branch
      %26 = sbr.rel (0) target = $region21
    $region20: #{integrand_nn_forward_fm.1} parent=1 // pred_region
      _
    $region21: #{integrand_nn_forward_fm.1} parent=1 // pred_fallthru
      _
    // Predicated region
    $region22: #{integrand_nn_forward_fm.1} parent=1 // pred_check
      _
    $region23: #{integrand_nn_forward_fm.1} parent=1 // pred_check_branch
      %28 = sbr.rel (0) target = $region25
    $region24: #{integrand_nn_forward_fm.1} parent=1 // pred_region
      _
    $region25: #{integrand_nn_forward_fm.1} parent=1 // pred_fallthru
      _
    // Predicated region
    $region26: #{integrand_nn_forward_fm.1} parent=1 // pred_check
      _
    $region27: #{integrand_nn_forward_fm.1} parent=1 // pred_check_branch
      %30 = sbr.rel (0) target = $region29
    $region28: #{integrand_nn_forward_fm.1} parent=1 // pred_region
      _
    $region29: #{integrand_nn_forward_fm.1} parent=1 // pred_fallthru
      _
    // Predicated region
    $region30: #{integrand_nn_forward_fm.1} parent=1 // pred_check
      _
    $region31: #{integrand_nn_forward_fm.1} parent=1 // pred_check_branch
      %32 = sbr.rel (0) target = $region33
    $region32: #{integrand_nn_forward_fm.1} parent=1 // pred_region
      _
    $region33: #{integrand_nn_forward_fm.1} parent=1 // pred_fallthru
      _
    // Predicated region
    $region34: #{integrand_nn_forward_fm.1} parent=1 // pred_check
      _
    $region35: #{integrand_nn_forward_fm.1} parent=1 // pred_check_branch
      %34 = sbr.rel (0) target = $region37
    $region36: #{integrand_nn_forward_fm.1} parent=1 // pred_region
      _
    $region37: #{integrand_nn_forward_fm.1} parent=1 // pred_fallthru
      _
    %v35 = vld [vmem:[%s0] sm:$0x1]
    %v36 = vld [vmem:[%s1] sm:$0x7]
    %v37 = vld [vmem:[%s2] sm:$0xff]
    %v38 = vld [vmem:[%s2 + $0x8] sm:$0xff]
    %v39 = vld [vmem:[%s2 + $0x10] sm:$0xff]
    %v40 = vld [vmem:[%s2 + $0x18] sm:$0xff]
    %v41 = vld [vmem:[%s3] sm:$0xff]
    %v42 = vld [vmem:[%s3 + $0x8] sm:$0xff]
    %v43 = vld [vmem:[%s3 + $0x10] sm:$0xff]
    %v44 = vld [vmem:[%s3 + $0x18] sm:$0xff]
    %46 = vset.pattern.permute.xlu0 0
    %47 = vperm.xlu0 %46, %v37
    %v48 = vpop.permute.xlu0 %47
    %51 = vset.pattern.permute.xlu0 0
    %52 = vperm.xlu0 %51, %v38
    %v53 = vpop.permute.xlu0 %52
    %56 = vset.pattern.permute.xlu0 0
    %57 = vperm.xlu0 %56, %v39
    %v58 = vpop.permute.xlu0 %57
    %61 = vset.pattern.permute.xlu0 0
    %62 = vperm.xlu0 %61, %v40
    %v63 = vpop.permute.xlu0 %62
    %v66 = vperm.slane %v35, 0
    %v68 = vmul.f32 %v48, %v66
    %v69 = vmul.f32 %v53, %v66
    %v70 = vmul.f32 %v58, %v66
    %v71 = vmul.f32 %v63, %v66
    %73 = vset.pattern.permute.xlu0 0
    %74 = vperm.xlu0 %73, %v41
    %v75 = vpop.permute.xlu0 %74
    %78 = vset.pattern.permute.xlu0 0
    %79 = vperm.xlu0 %78, %v42
    %v80 = vpop.permute.xlu0 %79
    %83 = vset.pattern.permute.xlu0 0
    %84 = vperm.xlu0 %83, %v43
    %v85 = vpop.permute.xlu0 %84
    %88 = vset.pattern.permute.xlu0 0
    %89 = vperm.xlu0 %88, %v44
    %v90 = vpop.permute.xlu0 %89
    %v92 = vperm.slane %v36, 0
    %v93 = vmul.f32 %v75, %v92
    %v94 = vmul.f32 %v80, %v92
    %v95 = vmul.f32 %v85, %v92
    %v96 = vmul.f32 %v90, %v92
    %v97 = vadd.f32 %v68, %v93
    %v98 = vadd.f32 %v69, %v94
    %v99 = vadd.f32 %v70, %v95
    %v100 = vadd.f32 %v71, %v96
    %101 = vset.pattern.permute.xlu0 1
    %102 = vperm.xlu0 %101, %v41
    %v103 = vpop.permute.xlu0 %102
    %105 = vset.pattern.permute.xlu0 1
    %106 = vperm.xlu0 %105, %v42
    %v107 = vpop.permute.xlu0 %106
    %109 = vset.pattern.permute.xlu0 1
    %110 = vperm.xlu0 %109, %v43
    %v111 = vpop.permute.xlu0 %110
    %113 = vset.pattern.permute.xlu0 1
    %114 = vperm.xlu0 %113, %v44
    %v115 = vpop.permute.xlu0 %114
    %v117 = vperm.slane %v36, 1
    %v118 = vmul.f32 %v103, %v117
    %v119 = vmul.f32 %v107, %v117
    %v120 = vmul.f32 %v111, %v117
    %v121 = vmul.f32 %v115, %v117
    %v122 = vadd.f32 %v97, %v118
    %v123 = vadd.f32 %v98, %v119
    %v124 = vadd.f32 %v99, %v120
    %v125 = vadd.f32 %v100, %v121
    %126 = vset.pattern.permute.xlu0 2
    %127 = vperm.xlu0 %126, %v41
    %v128 = vpop.permute.xlu0 %127
    %130 = vset.pattern.permute.xlu0 2
    %131 = vperm.xlu0 %130, %v42
    %v132 = vpop.permute.xlu0 %131
    %134 = vset.pattern.permute.xlu0 2
    %135 = vperm.xlu0 %134, %v43
    %v136 = vpop.permute.xlu0 %135
    %138 = vset.pattern.permute.xlu0 2
    %139 = vperm.xlu0 %138, %v44
    %v140 = vpop.permute.xlu0 %139
    %v142 = vperm.slane %v36, 2
    %v143 = vmul.f32 %v128, %v142
    %v144 = vmul.f32 %v132, %v142
    %v145 = vmul.f32 %v136, %v142
    %v146 = vmul.f32 %v140, %v142
    %v147 = vadd.f32 %v122, %v143
    %v148 = vadd.f32 %v123, %v144
    %v149 = vadd.f32 %v124, %v145
    %v150 = vadd.f32 %v125, %v146
    %v151 = vld [vmem:[%s4] sm:$0xff]
    %v152 = vld [vmem:[%s4 + $0x8] sm:$0xff]
    %v153 = vld [vmem:[%s4 + $0x10] sm:$0xff]
    %v154 = vld [vmem:[%s4 + $0x18] sm:$0xff]
    %156 = vset.pattern.permute.xlu0 0
    %157 = vperm.xlu0 %156, %v151
    %v158 = vpop.permute.xlu0 %157
    %161 = vset.pattern.permute.xlu0 0
    %162 = vperm.xlu0 %161, %v152
    %v163 = vpop.permute.xlu0 %162
    %166 = vset.pattern.permute.xlu0 0
    %167 = vperm.xlu0 %166, %v153
    %v168 = vpop.permute.xlu0 %167
    %171 = vset.pattern.permute.xlu0 0
    %172 = vperm.xlu0 %171, %v154
    %v173 = vpop.permute.xlu0 %172
    %v175 = vadd.f32 %v147, %v158
    %v176 = vadd.f32 %v148, %v163
    %v177 = vadd.f32 %v149, %v168
    %v178 = vadd.f32 %v150, %v173
    %v179 = vmax.f32 %v175, 0.0
    %v180 = vmax.f32 %v176, 0.0
    %v181 = vmax.f32 %v177, 0.0
    %v182 = vmax.f32 %v178, 0.0
    %v183 = vld [vmem:[%s5] sm:$0xff]
    %v184 = vld [vmem:[%s5 + $0x8] sm:$0xff]
    %v185 = vld [vmem:[%s5 + $0x10] sm:$0xff]
    %v186 = vld [vmem:[%s5 + $0x18] sm:$0xff]
    %v187 = vld [vmem:[%s6] sm:$0xff]
    %v188 = vld [vmem:[%s6 + $0x8] sm:$0xff]
    %v189 = vld [vmem:[%s6 + $0x10] sm:$0xff]
    %v190 = vld [vmem:[%s6 + $0x18] sm:$0xff]
    %192 = vset.pattern.permute.xlu0 0
    %193 = vperm.xlu0 %192, %v187
    %v194 = vpop.permute.xlu0 %193
    %197 = vset.pattern.permute.xlu0 0
    %198 = vperm.xlu0 %197, %v188
    %v199 = vpop.permute.xlu0 %198
    %202 = vset.pattern.permute.xlu0 0
    %203 = vperm.xlu0 %202, %v189
    %v204 = vpop.permute.xlu0 %203
    %207 = vset.pattern.permute.xlu0 0
    %208 = vperm.xlu0 %207, %v190
    %v209 = vpop.permute.xlu0 %208
    %vm211 = vcmask 261120
    %v213 = vsel %vm211, %v183, 0
    %v216 = vsel %vm211, %v184, 0
    %v219 = vsel %vm211, %v185, 0
    %v222 = vsel %vm211, %v186, 0
    %224 = vmatpush.msra.mxu0 0.0
    %225 = vmatpush.msra.mxu0 0.0
    %226 = vmatpush.msra.mxu0 0.0
    %227 = vmatpush.msra.mxu0 0.0
    %228 = vmatpush.msra.mxu0 0.0
    %229 = vmatpush.msra.mxu0 0.0
    %230 = vmatpush.msra.mxu0 0.0
    %231 = vmatpush.msra.mxu0 0.0
    %232 = vmatpush.msra.mxu0 0.0
    %233 = vmatpush.msra.mxu0 0.0
    %234 = vmatpush.msra.mxu0 0.0
    %235 = vmatpush.msra.mxu0 0.0
    %236 = vmatpush.msra.mxu0 %v182
    %237 = vmatpush.msra.mxu0 %v181
    %238 = vmatpush.msra.mxu0 %v180
    %239 = vmatpush.msra.mxu0 %v179
    %240 = vmatmul.f32.gmra.mxu0 %v213
    %v241 = vpop.f32.mrf.mxu0
    %v242 = vadd.f32 %v194, %v241
    %243 = vmatmul.f32.gmra.mxu0 %v216
    %v244 = vpop.f32.mrf.mxu0
    %v245 = vadd.f32 %v199, %v244
    %246 = vmatmul.f32.gmra.mxu0 %v219
    %v247 = vpop.f32.mrf.mxu0
    %v248 = vadd.f32 %v204, %v247
    %249 = vmatmul.f32.gmra.mxu0 %v222
    %v250 = vpop.f32.mrf.mxu0
    %v251 = vadd.f32 %v209, %v250
    %252 = vdwg.mxu0
    %v253 = vmax.f32 %v242, 0.0
    %v254 = vmax.f32 %v245, 0.0
    %v255 = vmax.f32 %v248, 0.0
    %v256 = vmax.f32 %v251, 0.0
    %v257 = vld [vmem:[%s7] sm:$0xff]
    %v258 = vld [vmem:[%s7 + $0x8] sm:$0xff]
    %v259 = vld [vmem:[%s7 + $0x10] sm:$0xff]
    %v260 = vld [vmem:[%s7 + $0x18] sm:$0xff]
    %262 = vset.pattern.permute.xlu0 0
    %263 = vperm.xlu0 %262, %v257
    %v264 = vpop.permute.xlu0 %263
    %267 = vset.pattern.permute.xlu0 0
    %268 = vperm.xlu0 %267, %v258
    %v269 = vpop.permute.xlu0 %268
    %272 = vset.pattern.permute.xlu0 0
    %273 = vperm.xlu0 %272, %v259
    %v274 = vpop.permute.xlu0 %273
    %277 = vset.pattern.permute.xlu0 0
    %278 = vperm.xlu0 %277, %v260
    %v279 = vpop.permute.xlu0 %278
    %v281 = vmul.f32 %v264, %v253
    %v282 = vmul.f32 %v269, %v254
    %v283 = vmul.f32 %v274, %v255
    %v284 = vmul.f32 %v279, %v256
    %v285 = vadd.f32 %v281, %v282
    %v286 = vadd.f32 %v285, %v283
    %v287 = vadd.f32 %v286, %v284
    %v288 = vrot.slane %v287, 4
    %v289 = vadd.f32 %v287, %v288
    %v290 = vrot.slane %v289, 2
    %v291 = vadd.f32 %v289, %v290
    %v292 = vrot.slane %v291, 1
    %v293 = vadd.f32 %v291, %v292
    %v294 = vld [vmem:[#allocation2] sm:$0x1]
    %296 = vset.pattern.permute.xlu0 0
    %297 = vperm.xlu0 %296, %v294
    %v298 = vpop.permute.xlu0 %297
    %v300 = vperm.slane %v298, 0
    %v301 = vadd.f32 %v293, %v300
    %vm302 = vcmp.gt.f32.partialorder %v301, 0.0
    %v303 = vadd.f32 %v301, 1.0
    %v304 = vmul.f32 %v301, 1.442695
    %v305 = vpow.pop %v304
    %v306 = vadd.f32 %v305, 1e-08
    %v307 = vsel %vm302, %v303, %v306
    %308 = vst [vmem:[#allocation3] sm:$0x1] %v307
    // Predicated region
    $region38: #{integrand_nn_forward_fm.1} parent=1 // pred_check
      _
    $region39: #{integrand_nn_forward_fm.1} parent=1 // pred_check_branch
      %310 = sbr.rel (0) target = $region41
    $region40: #{integrand_nn_forward_fm.1} parent=1 // pred_region
      %312 = vsyncadd [#allocation4], 0
      %s314 = sshll.u32 [#allocation3], 4
      %s315 = int_to_ptr.vmem [resolvable:$true] %s314
      %s316 = sshll.u32 %s9, 4
      %s317 = int_to_ptr.hbm [resolvable:$true] %s316
      %319 = dma.vmem_to_hbm [thread:$0]  %s315, 16, %s317, [#allocation4]
    $region41: #{integrand_nn_forward_fm.1} parent=1 // pred_fallthru
      _
    // Predicated region
    $region42: #{integrand_nn_forward_fm.1} parent=1 // pred_check
      _
    $region43: #{integrand_nn_forward_fm.1} parent=1 // pred_check_branch
      %321 = sbr.rel (0) target = $region45
    $region44: #{integrand_nn_forward_fm.1} parent=1 // pred_region
      %323 = dma.done [#allocation4], 16
    $region45: #{integrand_nn_forward_fm.1} parent=1 // pred_fallthru
      _
    %324 = vsyncpa [#allocation4], 1

</llo_original>
